<compile_context>
chip_gen: v7x
topology: tpu7x:2x2x1
jax: 0.10.0
libtpu: 0.0.40
codegen_flags: <defaults>
</compile_context>

<pallas_src>
import numpy as np
import jax
import jax.numpy as jnp
from jax.experimental import pallas as pl
from jax.experimental.pallas import tpu as pltpu

_default_lats = np.linspace(-87.1875, 87.1875, num=32)


def estimate_weights(lats=None) -> jnp.ndarray:
    """cos(lat) weights normalized to mean 1, shape (LAT, 1)."""
    if lats is None:
        lats = _default_lats
    w = np.cos(np.deg2rad(lats))
    w = w / w.mean()
    return jnp.asarray(w[:, None], dtype=jnp.float32)


def _weighted_sq_err_kernel(w_ref, p_ref, t_ref, o_ref):
    # w_ref: (1, tk) weight chunk (same lane chunk as the data tiles).
    # p_ref/t_ref/o_ref: (tb, tk) lane-dense tiles.
    diff = p_ref[...] - t_ref[...]
    o_ref[...] = w_ref[...] * (diff * diff)


def _choose_tiles(n_rows: int, k: int, itemsize: int,
                  target_tile_bytes: int = 4 << 20):
    """Pick (tb, tk): ~4 MiB per input tile, (8,128)-aligned, VMEM-safe.

    2 inputs + 1 output, double-buffered => 6 resident data tiles; at 4 MiB
    each that's ~24 MiB (+ a bounded weight buffer), under the 48 MiB limit
    and v7x's 64 MiB physical VMEM.
    """
    # --- lane (K) tiling: bound tile size for arbitrarily large LAT*LON ----
    row_bytes = k * itemsize
    if 8 * row_bytes <= target_tile_bytes or k <= 128:
        tk = k                                  # full rows still fit the budget
    else:
        tk = ((target_tile_bytes // (8 * itemsize)) // 128) * 128
        tk = max(128, min(tk, k))
    tile_row_bytes = tk * itemsize

    # --- sublane (row) tiling ----------------------------------------------
    tb = max(1, target_tile_bytes // max(tile_row_bytes, 1))
    tb = min(tb, n_rows)
    if tb < n_rows:
        # Partial-coverage blocks must keep the sublane dim a multiple of 8.
        tb = max(8, (tb // 8) * 8)

    # --- megacore: prefer >=2 grid steps for non-tiny problems --------------
    if tb == n_rows and tk == k and n_rows * k * itemsize >= (1 << 20):
        if n_rows >= 16 and (n_rows // 2) >= 8:
            tb = ((n_rows // 2) // 8) * 8
        elif k >= 256 and (k // 2) >= 128:
            tk = ((k // 2) // 128) * 128
    return tb, tk


def weighted_score(pred: jnp.ndarray, target: jnp.ndarray,
                   weights: jnp.ndarray, *, force_pallas: bool = False
                   ) -> jnp.ndarray:
    """pred/target: (B, C, LAT, LON); weights: (LAT, 1). Returns same shape."""
    B, C, LAT, LON = pred.shape
    assert weights.shape == (LAT, 1)
    N = B * C
    K = LAT * LON
    itemsize = jnp.dtype(pred.dtype).itemsize

    # Small-problem fallback: a single-step pallas_call is launch-dominated;
    # XLA's fused elementwise matches or beats it at these sizes.
    if not force_pallas and N * K * itemsize < (2 << 20):
        w4 = weights.astype(pred.dtype)[None, None, :, :]
        return w4 * (pred - target) ** 2

    # Lane-dense 2-D layout: each row is one full (lat, lon) field.
    p2 = pred.reshape(N, K)
    t2 = target.reshape(N, K)
    # Pre-broadcast weights to a lane-dense row (free layout plumbing in the
    # wrapper); the same pattern repeats for every (batch, channel) row.
    w_row = jnp.broadcast_to(weights.astype(pred.dtype), (LAT, LON)).reshape(1, K)

    tb, tk = _choose_tiles(N, K, itemsize)
    grid = (pl.cdiv(N, tb), pl.cdiv(K, tk))

    cost = pl.CostEstimate(
        flops=3 * N * K,
        transcendentals=0,
        bytes_accessed=(3 * N * K + K) * itemsize,
    )

    out = pl.pallas_call(
        _weighted_sq_err_kernel,
        out_shape=jax.ShapeDtypeStruct((N, K), pred.dtype),
        grid=grid,
        in_specs=[
            pl.BlockSpec((1, tk), lambda i, j: (0, j)),    # weight chunk
            pl.BlockSpec((tb, tk), lambda i, j: (i, j)),   # pred tile
            pl.BlockSpec((tb, tk), lambda i, j: (i, j)),   # target tile
        ],
        out_specs=pl.BlockSpec((tb, tk), lambda i, j: (i, j)),
        compiler_params=pltpu.CompilerParams(
            dimension_semantics=("parallel", "parallel"),
            vmem_limit_bytes=48 << 20,
        ),
        cost_estimate=cost,
    )(w_row, p2, t2)

    return out.reshape(B, C, LAT, LON)


if __name__ == "__main__":
    key = jax.random.PRNGKey(0)
    weights = estimate_weights()     # (32, 1), LAT=32 matches the default grid

    # --- Test 1: small demo shape, force the Pallas path -------------------
    k1, k2 = jax.random.split(key)
    B, C, LAT, LON = 2, 4, 32, 128
    pred = jax.random.normal(k1, (B, C, LAT, LON), dtype=jnp.float32)
    target = jax.random.normal(k2, (B, C, LAT, LON), dtype=jnp.float32)

    out = weighted_score(pred, target, weights, force_pallas=True)
    out = jax.block_until_ready(out)
    ref = weights[None, None, :, :] * (pred - target) ** 2
    np.testing.assert_allclose(np.asarray(out), np.asarray(ref),
                               rtol=1e-5, atol=1e-5)

    # --- Test 2: exercises K-tiling / multi-step grid path ------------------
    k3, k4 = jax.random.split(k2)
    B2, C2, LAT2, LON2 = 2, 4, 32, 2048
    pred2 = jax.random.normal(k3, (B2, C2, LAT2, LON2), dtype=jnp.float32)
    target2 = jax.random.normal(k4, (B2, C2, LAT2, LON2), dtype=jnp.float32)

    out2 = weighted_score(pred2, target2, weights)
    out2 = jax.block_until_ready(out2)
    ref2 = weights[None, None, :, :] * (pred2 - target2) ** 2
    np.testing.assert_allclose(np.asarray(out2), np.asarray(ref2),
                               rtol=1e-5, atol=1e-5)

    print("KERNEL_OK")
</pallas_src>

<mosaic_0001>
module attributes {stable_mosaic.version = 11 : i64} {
  func.func @_weighted_sq_err_kernel(%arg0: i32, %arg1: i32, %arg2: memref<1x4096xf32, #tpu.memory_space<vmem>>, %arg3: memref<8x4096xf32, #tpu.memory_space<vmem>>, %arg4: memref<8x4096xf32, #tpu.memory_space<vmem>>, %arg5: memref<8x4096xf32, #tpu.memory_space<vmem>>) attributes {dimension_semantics = [#tpu.dimension_semantics<parallel>, #tpu.dimension_semantics<parallel>], iteration_bounds = array<i64: 1, 1>, scalar_prefetch = 0 : i64, scratch_operands = 0 : i64, tpu.core_type = #tpu.core_type<tc>, window_params = [{transform_indices = @transform_0, window_bounds = array<i64: 1, 4096>}, {transform_indices = @transform_1, window_bounds = array<i64: 8, 4096>}, {transform_indices = @transform_2, window_bounds = array<i64: 8, 4096>}, {transform_indices = @transform_3, window_bounds = array<i64: 8, 4096>}]} {
    %c0 = arith.constant 0 : index
    %c0_0 = arith.constant 0 : index
    %0 = vector.load %arg3[%c0, %c0_0] : memref<8x4096xf32, #tpu.memory_space<vmem>>, vector<8x4096xf32>
    %c0_1 = arith.constant 0 : index
    %c0_2 = arith.constant 0 : index
    %1 = vector.load %arg4[%c0_1, %c0_2] : memref<8x4096xf32, #tpu.memory_space<vmem>>, vector<8x4096xf32>
    %2 = arith.subf %0, %1 : vector<8x4096xf32>
    %c0_3 = arith.constant 0 : index
    %c0_4 = arith.constant 0 : index
    %3 = vector.load %arg2[%c0_3, %c0_4] : memref<1x4096xf32, #tpu.memory_space<vmem>>, vector<1x4096xf32>
    %4 = arith.mulf %2, %2 : vector<8x4096xf32>
    %5 = vector.broadcast %3 : vector<1x4096xf32> to vector<8x4096xf32>
    %6 = arith.mulf %5, %4 : vector<8x4096xf32>
    %c0_5 = arith.constant 0 : index
    %c0_6 = arith.constant 0 : index
    %7 = vector.load %arg5[%c0_5, %c0_6] : memref<8x4096xf32, #tpu.memory_space<vmem>>, vector<8x4096xf32>
    tpu.vector_store %arg5[%c0_5, %c0_6], %6 {strides = array<i32>} : memref<8x4096xf32, #tpu.memory_space<vmem>>, vector<8x4096xf32>,
    return
  }
  func.func @transform_0(%arg0: i32, %arg1: i32) -> (i32, i32) {
    %c0_i32 = arith.constant 0 : i32
    %c0_i32_0 = arith.constant 0 : i32
    return %c0_i32, %arg1 : i32, i32
  }
  func.func @transform_1(%arg0: i32, %arg1: i32) -> (i32, i32) {
    %c0_i32 = arith.constant 0 : i32
    return %arg0, %arg1 : i32, i32
  }
  func.func @transform_2(%arg0: i32, %arg1: i32) -> (i32, i32) {
    %c0_i32 = arith.constant 0 : i32
    return %arg0, %arg1 : i32, i32
  }
  func.func @transform_3(%arg0: i32, %arg1: i32) -> (i32, i32) {
    %c0_i32 = arith.constant 0 : i32
    return %arg0, %arg1 : i32, i32
  }
}

</mosaic_0001>

<llo_original>
// kernel: tpu_custom_call.1
$region0: #{tpu_custom_call.1}
  #allocation0 [shape = 'u32[]', space=smem, size = 0x4, offset = 0x4, fixed_abs, tag = 'smem constant byte address 0x4 - core index']
  #allocation1 [shape = 'u32[144,128]{1,0:T(1,128)}', space=vmem, size = 0x12000, scoped, tag = 'internal scratch']
  %s0 = inlined_call_operand.hbm [shape: f32[1,4096], index: 0, kind: input, shape index: {}]
  %s1 = inlined_call_operand.hbm [shape: f32[8,4096], index: 1, kind: input, shape index: {}]
  %s2 = inlined_call_operand.hbm [shape: f32[8,4096], index: 2, kind: input, shape index: {}]
  %s3 = inlined_call_operand.hbm [shape: f32[8,4096], index: 3, kind: output, shape index: {}]
  %s4 = sld [smem:[#allocation0]]
  $region34: #{tpu_custom_call.1} parent=0
    _
  %s6 = ssub.s32 1, %s4
  %s7 = scalar_select 0, %s6, %s4
  $region1: #{tpu_custom_call.1} parent=0
    #allocation2 [shape = 'u8[16384]{0}', space=vmem, size = 0x4000, scoped, tag = 'input window, operand 0, single buffered']
    #allocation3 [shape = 's32[1]{0}', space=sflag, size = 0x4, scoped, tag = 'scoped memory for tpu_custom_call.1']
    #allocation4 [shape = 's32[1]{0}', space=sflag, size = 0x4, scoped, tag = 'scoped memory for tpu_custom_call.1']
    #allocation5 [shape = 'u8[131072]{0}', space=vmem, size = 0x20000, scoped, tag = 'input window, operand 1, single buffered']
    #allocation6 [shape = 's32[1]{0}', space=sflag, size = 0x4, scoped, tag = 'scoped memory for tpu_custom_call.1']
    #allocation7 [shape = 'u8[131072]{0}', space=vmem, size = 0x20000, scoped, tag = 'input window, operand 2, single buffered']
    #allocation8 [shape = 'u8[131072]{0}', space=vmem, size = 0x20000, scoped, tag = 'output window, operand 0, single buffered']
    %8 = vsyncpa [#allocation3], 0
    %9 = vsyncpa [#allocation6], 0
    %10 = vsyncpa [#allocation4], 0
    // Predicated region
    $region2: #{tpu_custom_call.1} parent=1 // pred_check
      _
    $region3: #{tpu_custom_call.1} parent=1 // pred_check_branch
      %12 = sbr.rel (0) target = $region5
    $region4: #{tpu_custom_call.1} parent=1 // pred_region
      %s14 = ssub.s32 512, 512
      %15 = vsyncadd [#allocation3], %s14
      %s17 = sshll.u32 [#allocation2], 4
      %s18 = int_to_ptr.vmem [resolvable:$true] %s17
      %20 = dma.hbm_to_vmem [thread:$0]  %s0, 512, %s18, [#allocation3]
    $region5: #{tpu_custom_call.1} parent=1 // pred_fallthru
      _
    // Predicated region
    $region6: #{tpu_custom_call.1} parent=1 // pred_check
      _
    $region7: #{tpu_custom_call.1} parent=1 // pred_check_branch
      %22 = sbr.rel (0) target = $region9
    $region8: #{tpu_custom_call.1} parent=1 // pred_region
      %s24 = ssub.s32 4096, 4096
      %25 = vsyncadd [#allocation6], %s24
      %s27 = sshll.u32 [#allocation5], 4
      %s28 = int_to_ptr.vmem [resolvable:$true] %s27
      %30 = dma.hbm_to_vmem [thread:$0]  %s1, 4096, %s28, [#allocation6]
    $region9: #{tpu_custom_call.1} parent=1 // pred_fallthru
      _
    // Predicated region
    $region10: #{tpu_custom_call.1} parent=1 // pred_check
      _
    $region11: #{tpu_custom_call.1} parent=1 // pred_check_branch
      %32 = sbr.rel (0) target = $region13
    $region12: #{tpu_custom_call.1} parent=1 // pred_region
      %s34 = ssub.s32 4096, 4096
      %35 = vsyncadd [#allocation6], %s34
      %s37 = sshll.u32 [#allocation7], 4
      %s38 = int_to_ptr.vmem [resolvable:$true] %s37
      %40 = dma.hbm_to_vmem [thread:$0]  %s2, 4096, %s38, [#allocation6]
    $region13: #{tpu_custom_call.1} parent=1 // pred_fallthru
      _
    // Predicated region
    $region14: #{tpu_custom_call.1} parent=1 // pred_check
      _
    $region15: #{tpu_custom_call.1} parent=1 // pred_check_branch
      %42 = sbr.rel (0) target = $region17
    $region16: #{tpu_custom_call.1} parent=1 // pred_region
      %43 = dma.done [#allocation3], 512
    $region17: #{tpu_custom_call.1} parent=1 // pred_fallthru
      _
    // Predicated region
    $region18: #{tpu_custom_call.1} parent=1 // pred_check
      _
    $region19: #{tpu_custom_call.1} parent=1 // pred_check_branch
      %45 = sbr.rel (0) target = $region21
    $region20: #{tpu_custom_call.1} parent=1 // pred_region
      %46 = dma.done [#allocation6], 4096
    $region21: #{tpu_custom_call.1} parent=1 // pred_fallthru
      _
    // Predicated region
    $region22: #{tpu_custom_call.1} parent=1 // pred_check
      _
    $region23: #{tpu_custom_call.1} parent=1 // pred_check_branch
      %48 = sbr.rel (0) target = $region25
    $region24: #{tpu_custom_call.1} parent=1 // pred_region
      %49 = dma.done [#allocation6], 4096
    $region25: #{tpu_custom_call.1} parent=1 // pred_fallthru
      _
    %v50 = vld [vmem:[#allocation5] sm:$0xff]
    %v51 = vld [vmem:[#allocation5 + $0x8] sm:$0xff]
    %v52 = vld [vmem:[#allocation5 + $0x10] sm:$0xff]
    %v53 = vld [vmem:[#allocation5 + $0x18] sm:$0xff]
    %v54 = vld [vmem:[#allocation5 + $0x20] sm:$0xff]
    %v55 = vld [vmem:[#allocation5 + $0x28] sm:$0xff]
    %v56 = vld [vmem:[#allocation5 + $0x30] sm:$0xff]
    %v57 = vld [vmem:[#allocation5 + $0x38] sm:$0xff]
    %v58 = vld [vmem:[#allocation5 + $0x40] sm:$0xff]
    %v59 = vld [vmem:[#allocation5 + $0x48] sm:$0xff]
    %v60 = vld [vmem:[#allocation5 + $0x50] sm:$0xff]
    %v61 = vld [vmem:[#allocation5 + $0x58] sm:$0xff]
    %v62 = vld [vmem:[#allocation5 + $0x60] sm:$0xff]
    %v63 = vld [vmem:[#allocation5 + $0x68] sm:$0xff]
    %v64 = vld [vmem:[#allocation5 + $0x70] sm:$0xff]
    %v65 = vld [vmem:[#allocation5 + $0x78] sm:$0xff]
    %v66 = vld [vmem:[#allocation5 + $0x80] sm:$0xff]
    %v67 = vld [vmem:[#allocation5 + $0x88] sm:$0xff]
    %v68 = vld [vmem:[#allocation5 + $0x90] sm:$0xff]
    %v69 = vld [vmem:[#allocation5 + $0x98] sm:$0xff]
    %v70 = vld [vmem:[#allocation5 + $0xa0] sm:$0xff]
    %v71 = vld [vmem:[#allocation5 + $0xa8] sm:$0xff]
    %v72 = vld [vmem:[#allocation5 + $0xb0] sm:$0xff]
    %v73 = vld [vmem:[#allocation5 + $0xb8] sm:$0xff]
    %v74 = vld [vmem:[#allocation5 + $0xc0] sm:$0xff]
    %v75 = vld [vmem:[#allocation5 + $0xc8] sm:$0xff]
    %v76 = vld [vmem:[#allocation5 + $0xd0] sm:$0xff]
    %v77 = vld [vmem:[#allocation5 + $0xd8] sm:$0xff]
    %v78 = vld [vmem:[#allocation5 + $0xe0] sm:$0xff]
    %v79 = vld [vmem:[#allocation5 + $0xe8] sm:$0xff]
    %v80 = vld [vmem:[#allocation5 + $0xf0] sm:$0xff]
    %v81 = vld [vmem:[#allocation5 + $0xf8] sm:$0xff]
    %v82 = vld [vmem:[#allocation7] sm:$0xff]
    %v83 = vld [vmem:[#allocation7 + $0x8] sm:$0xff]
    %v84 = vld [vmem:[#allocation7 + $0x10] sm:$0xff]
    %v85 = vld [vmem:[#allocation7 + $0x18] sm:$0xff]
    %v86 = vld [vmem:[#allocation7 + $0x20] sm:$0xff]
    %v87 = vld [vmem:[#allocation7 + $0x28] sm:$0xff]
    %v88 = vld [vmem:[#allocation7 + $0x30] sm:$0xff]
    %v89 = vld [vmem:[#allocation7 + $0x38] sm:$0xff]
    %v90 = vld [vmem:[#allocation7 + $0x40] sm:$0xff]
    %v91 = vld [vmem:[#allocation7 + $0x48] sm:$0xff]
    %v92 = vld [vmem:[#allocation7 + $0x50] sm:$0xff]
    %v93 = vld [vmem:[#allocation7 + $0x58] sm:$0xff]
    %v94 = vld [vmem:[#allocation7 + $0x60] sm:$0xff]
    %v95 = vld [vmem:[#allocation7 + $0x68] sm:$0xff]
    %v96 = vld [vmem:[#allocation7 + $0x70] sm:$0xff]
    %v97 = vld [vmem:[#allocation7 + $0x78] sm:$0xff]
    %v98 = vld [vmem:[#allocation7 + $0x80] sm:$0xff]
    %v99 = vld [vmem:[#allocation7 + $0x88] sm:$0xff]
    %v100 = vld [vmem:[#allocation7 + $0x90] sm:$0xff]
    %v101 = vld [vmem:[#allocation7 + $0x98] sm:$0xff]
    %v102 = vld [vmem:[#allocation7 + $0xa0] sm:$0xff]
    %v103 = vld [vmem:[#allocation7 + $0xa8] sm:$0xff]
    %v104 = vld [vmem:[#allocation7 + $0xb0] sm:$0xff]
    %v105 = vld [vmem:[#allocation7 + $0xb8] sm:$0xff]
    %v106 = vld [vmem:[#allocation7 + $0xc0] sm:$0xff]
    %v107 = vld [vmem:[#allocation7 + $0xc8] sm:$0xff]
    %v108 = vld [vmem:[#allocation7 + $0xd0] sm:$0xff]
    %v109 = vld [vmem:[#allocation7 + $0xd8] sm:$0xff]
    %v110 = vld [vmem:[#allocation7 + $0xe0] sm:$0xff]
    %v111 = vld [vmem:[#allocation7 + $0xe8] sm:$0xff]
    %v112 = vld [vmem:[#allocation7 + $0xf0] sm:$0xff]
    %v113 = vld [vmem:[#allocation7 + $0xf8] sm:$0xff]
    %v114 = vsub.f32 %v50, %v82
    %v115 = vsub.f32 %v51, %v83
    %v116 = vsub.f32 %v52, %v84
    %v117 = vsub.f32 %v53, %v85
    %v118 = vsub.f32 %v54, %v86
    %v119 = vsub.f32 %v55, %v87
    %v120 = vsub.f32 %v56, %v88
    %v121 = vsub.f32 %v57, %v89
    %v122 = vsub.f32 %v58, %v90
    %v123 = vsub.f32 %v59, %v91
    %v124 = vsub.f32 %v60, %v92
    %v125 = vsub.f32 %v61, %v93
    %v126 = vsub.f32 %v62, %v94
    %v127 = vsub.f32 %v63, %v95
    %v128 = vsub.f32 %v64, %v96
    %v129 = vsub.f32 %v65, %v97
    %v130 = vsub.f32 %v66, %v98
    %v131 = vsub.f32 %v67, %v99
    %v132 = vsub.f32 %v68, %v100
    %v133 = vsub.f32 %v69, %v101
    %v134 = vsub.f32 %v70, %v102
    %v135 = vsub.f32 %v71, %v103
    %v136 = vsub.f32 %v72, %v104
    %v137 = vsub.f32 %v73, %v105
    %v138 = vsub.f32 %v74, %v106
    %v139 = vsub.f32 %v75, %v107
    %v140 = vsub.f32 %v76, %v108
    %v141 = vsub.f32 %v77, %v109
    %v142 = vsub.f32 %v78, %v110
    %v143 = vsub.f32 %v79, %v111
    %v144 = vsub.f32 %v80, %v112
    %v145 = vsub.f32 %v81, %v113
    %v146 = vld [vmem:[#allocation2] sm:$0xff]
    %v147 = vld [vmem:[#allocation2 + $0x8] sm:$0xff]
    %v148 = vld [vmem:[#allocation2 + $0x10] sm:$0xff]
    %v149 = vld [vmem:[#allocation2 + $0x18] sm:$0xff]
    %v150 = vmul.f32 %v114, %v114
    %v151 = vmul.f32 %v115, %v115
    %v152 = vmul.f32 %v116, %v116
    %v153 = vmul.f32 %v117, %v117
    %v154 = vmul.f32 %v118, %v118
    %v155 = vmul.f32 %v119, %v119
    %v156 = vmul.f32 %v120, %v120
    %v157 = vmul.f32 %v121, %v121
    %v158 = vmul.f32 %v122, %v122
    %v159 = vmul.f32 %v123, %v123
    %v160 = vmul.f32 %v124, %v124
    %v161 = vmul.f32 %v125, %v125
    %v162 = vmul.f32 %v126, %v126
    %v163 = vmul.f32 %v127, %v127
    %v164 = vmul.f32 %v128, %v128
    %v165 = vmul.f32 %v129, %v129
    %v166 = vmul.f32 %v130, %v130
    %v167 = vmul.f32 %v131, %v131
    %v168 = vmul.f32 %v132, %v132
    %v169 = vmul.f32 %v133, %v133
    %v170 = vmul.f32 %v134, %v134
    %v171 = vmul.f32 %v135, %v135
    %v172 = vmul.f32 %v136, %v136
    %v173 = vmul.f32 %v137, %v137
    %v174 = vmul.f32 %v138, %v138
    %v175 = vmul.f32 %v139, %v139
    %v176 = vmul.f32 %v140, %v140
    %v177 = vmul.f32 %v141, %v141
    %v178 = vmul.f32 %v142, %v142
    %v179 = vmul.f32 %v143, %v143
    %v180 = vmul.f32 %v144, %v144
    %v181 = vmul.f32 %v145, %v145
    %v186 = vlaneseq
    %v187 = vshrl.u32 %v186, 7
    %v188 = vsub.s32 0, %v187
    %v189 = vrot.slane %v146, %v188
    %v190 = vlaneseq
    %v191 = vshrl.u32 %v190, 7
    %v192 = vsub.s32 1, %v191
    %v193 = vrot.slane %v146, %v192
    %v194 = vlaneseq
    %v195 = vshrl.u32 %v194, 7
    %v196 = vsub.s32 2, %v195
    %v197 = vrot.slane %v146, %v196
    %v198 = vlaneseq
    %v199 = vshrl.u32 %v198, 7
    %v200 = vsub.s32 3, %v199
    %v201 = vrot.slane %v146, %v200
    %v202 = vlaneseq
    %v203 = vshrl.u32 %v202, 7
    %v204 = vsub.s32 4, %v203
    %v205 = vrot.slane %v146, %v204
    %v206 = vlaneseq
    %v207 = vshrl.u32 %v206, 7
    %v208 = vsub.s32 5, %v207
    %v209 = vrot.slane %v146, %v208
    %v210 = vlaneseq
    %v211 = vshrl.u32 %v210, 7
    %v212 = vsub.s32 6, %v211
    %v213 = vrot.slane %v146, %v212
    %v214 = vlaneseq
    %v215 = vshrl.u32 %v214, 7
    %v216 = vsub.s32 7, %v215
    %v217 = vrot.slane %v146, %v216
    %v218 = vlaneseq
    %v219 = vshrl.u32 %v218, 7
    %v220 = vsub.s32 0, %v219
    %v221 = vrot.slane %v147, %v220
    %v222 = vlaneseq
    %v223 = vshrl.u32 %v222, 7
    %v224 = vsub.s32 1, %v223
    %v225 = vrot.slane %v147, %v224
    %v226 = vlaneseq
    %v227 = vshrl.u32 %v226, 7
    %v228 = vsub.s32 2, %v227
    %v229 = vrot.slane %v147, %v228
    %v230 = vlaneseq
    %v231 = vshrl.u32 %v230, 7
    %v232 = vsub.s32 3, %v231
    %v233 = vrot.slane %v147, %v232
    %v234 = vlaneseq
    %v235 = vshrl.u32 %v234, 7
    %v236 = vsub.s32 4, %v235
    %v237 = vrot.slane %v147, %v236
    %v238 = vlaneseq
    %v239 = vshrl.u32 %v238, 7
    %v240 = vsub.s32 5, %v239
    %v241 = vrot.slane %v147, %v240
    %v242 = vlaneseq
    %v243 = vshrl.u32 %v242, 7
    %v244 = vsub.s32 6, %v243
    %v245 = vrot.slane %v147, %v244
    %v246 = vlaneseq
    %v247 = vshrl.u32 %v246, 7
    %v248 = vsub.s32 7, %v247
    %v249 = vrot.slane %v147, %v248
    %v250 = vlaneseq
    %v251 = vshrl.u32 %v250, 7
    %v252 = vsub.s32 0, %v251
    %v253 = vrot.slane %v148, %v252
    %v254 = vlaneseq
    %v255 = vshrl.u32 %v254, 7
    %v256 = vsub.s32 1, %v255
    %v257 = vrot.slane %v148, %v256
    %v258 = vlaneseq
    %v259 = vshrl.u32 %v258, 7
    %v260 = vsub.s32 2, %v259
    %v261 = vrot.slane %v148, %v260
    %v262 = vlaneseq
    %v263 = vshrl.u32 %v262, 7
    %v264 = vsub.s32 3, %v263
    %v265 = vrot.slane %v148, %v264
    %v266 = vlaneseq
    %v267 = vshrl.u32 %v266, 7
    %v268 = vsub.s32 4, %v267
    %v269 = vrot.slane %v148, %v268
    %v270 = vlaneseq
    %v271 = vshrl.u32 %v270, 7
    %v272 = vsub.s32 5, %v271
    %v273 = vrot.slane %v148, %v272
    %v274 = vlaneseq
    %v275 = vshrl.u32 %v274, 7
    %v276 = vsub.s32 6, %v275
    %v277 = vrot.slane %v148, %v276
    %v278 = vlaneseq
    %v279 = vshrl.u32 %v278, 7
    %v280 = vsub.s32 7, %v279
    %v281 = vrot.slane %v148, %v280
    %v282 = vlaneseq
    %v283 = vshrl.u32 %v282, 7
    %v284 = vsub.s32 0, %v283
    %v285 = vrot.slane %v149, %v284
    %v286 = vlaneseq
    %v287 = vshrl.u32 %v286, 7
    %v288 = vsub.s32 1, %v287
    %v289 = vrot.slane %v149, %v288
    %v290 = vlaneseq
    %v291 = vshrl.u32 %v290, 7
    %v292 = vsub.s32 2, %v291
    %v293 = vrot.slane %v149, %v292
    %v294 = vlaneseq
    %v295 = vshrl.u32 %v294, 7
    %v296 = vsub.s32 3, %v295
    %v297 = vrot.slane %v149, %v296
    %v298 = vlaneseq
    %v299 = vshrl.u32 %v298, 7
    %v300 = vsub.s32 4, %v299
    %v301 = vrot.slane %v149, %v300
    %v302 = vlaneseq
    %v303 = vshrl.u32 %v302, 7
    %v304 = vsub.s32 5, %v303
    %v305 = vrot.slane %v149, %v304
    %v306 = vlaneseq
    %v307 = vshrl.u32 %v306, 7
    %v308 = vsub.s32 6, %v307
    %v309 = vrot.slane %v149, %v308
    %v310 = vlaneseq
    %v311 = vshrl.u32 %v310, 7
    %v312 = vsub.s32 7, %v311
    %v313 = vrot.slane %v149, %v312
    %v346 = vmul.f32 %v189, %v150
    %v347 = vmul.f32 %v193, %v151
    %v348 = vmul.f32 %v197, %v152
    %v349 = vmul.f32 %v201, %v153
    %v350 = vmul.f32 %v205, %v154
    %v351 = vmul.f32 %v209, %v155
    %v352 = vmul.f32 %v213, %v156
    %v353 = vmul.f32 %v217, %v157
    %v354 = vmul.f32 %v221, %v158
    %v355 = vmul.f32 %v225, %v159
    %v356 = vmul.f32 %v229, %v160
    %v357 = vmul.f32 %v233, %v161
    %v358 = vmul.f32 %v237, %v162
    %v359 = vmul.f32 %v241, %v163
    %v360 = vmul.f32 %v245, %v164
    %v361 = vmul.f32 %v249, %v165
    %v362 = vmul.f32 %v253, %v166
    %v363 = vmul.f32 %v257, %v167
    %v364 = vmul.f32 %v261, %v168
    %v365 = vmul.f32 %v265, %v169
    %v366 = vmul.f32 %v269, %v170
    %v367 = vmul.f32 %v273, %v171
    %v368 = vmul.f32 %v277, %v172
    %v369 = vmul.f32 %v281, %v173
    %v370 = vmul.f32 %v285, %v174
    %v371 = vmul.f32 %v289, %v175
    %v372 = vmul.f32 %v293, %v176
    %v373 = vmul.f32 %v297, %v177
    %v374 = vmul.f32 %v301, %v178
    %v375 = vmul.f32 %v305, %v179
    %v376 = vmul.f32 %v309, %v180
    %v377 = vmul.f32 %v313, %v181
    %378 = vst [vmem:[#allocation8] sm:$0xff] %v346
    %379 = vst [vmem:[#allocation8 + $0x8] sm:$0xff] %v347
    %380 = vst [vmem:[#allocation8 + $0x10] sm:$0xff] %v348
    %381 = vst [vmem:[#allocation8 + $0x18] sm:$0xff] %v349
    %382 = vst [vmem:[#allocation8 + $0x20] sm:$0xff] %v350
    %383 = vst [vmem:[#allocation8 + $0x28] sm:$0xff] %v351
    %384 = vst [vmem:[#allocation8 + $0x30] sm:$0xff] %v352
    %385 = vst [vmem:[#allocation8 + $0x38] sm:$0xff] %v353
    %386 = vst [vmem:[#allocation8 + $0x40] sm:$0xff] %v354
    %387 = vst [vmem:[#allocation8 + $0x48] sm:$0xff] %v355
    %388 = vst [vmem:[#allocation8 + $0x50] sm:$0xff] %v356
    %389 = vst [vmem:[#allocation8 + $0x58] sm:$0xff] %v357
    %390 = vst [vmem:[#allocation8 + $0x60] sm:$0xff] %v358
    %391 = vst [vmem:[#allocation8 + $0x68] sm:$0xff] %v359
    %392 = vst [vmem:[#allocation8 + $0x70] sm:$0xff] %v360
    %393 = vst [vmem:[#allocation8 + $0x78] sm:$0xff] %v361
    %394 = vst [vmem:[#allocation8 + $0x80] sm:$0xff] %v362
    %395 = vst [vmem:[#allocation8 + $0x88] sm:$0xff] %v363
    %396 = vst [vmem:[#allocation8 + $0x90] sm:$0xff] %v364
    %397 = vst [vmem:[#allocation8 + $0x98] sm:$0xff] %v365
    %398 = vst [vmem:[#allocation8 + $0xa0] sm:$0xff] %v366
    %399 = vst [vmem:[#allocation8 + $0xa8] sm:$0xff] %v367
    %400 = vst [vmem:[#allocation8 + $0xb0] sm:$0xff] %v368
    %401 = vst [vmem:[#allocation8 + $0xb8] sm:$0xff] %v369
    %402 = vst [vmem:[#allocation8 + $0xc0] sm:$0xff] %v370
    %403 = vst [vmem:[#allocation8 + $0xc8] sm:$0xff] %v371
    %404 = vst [vmem:[#allocation8 + $0xd0] sm:$0xff] %v372
    %405 = vst [vmem:[#allocation8 + $0xd8] sm:$0xff] %v373
    %406 = vst [vmem:[#allocation8 + $0xe0] sm:$0xff] %v374
    %407 = vst [vmem:[#allocation8 + $0xe8] sm:$0xff] %v375
    %408 = vst [vmem:[#allocation8 + $0xf0] sm:$0xff] %v376
    %409 = vst [vmem:[#allocation8 + $0xf8] sm:$0xff] %v377
    // Predicated region
    $region26: #{tpu_custom_call.1} parent=1 // pred_check
      _
    $region27: #{tpu_custom_call.1} parent=1 // pred_check_branch
      %411 = sbr.rel (0) target = $region29
    $region28: #{tpu_custom_call.1} parent=1 // pred_region
      %s413 = ssub.s32 4096, 4096
      %414 = vsyncadd [#allocation4], %s413
      %s416 = sshll.u32 [#allocation8], 4
      %s417 = int_to_ptr.vmem [resolvable:$true] %s416
      %419 = dma.vmem_to_hbm [thread:$0]  %s417, 4096, %s3, [#allocation4]
    $region29: #{tpu_custom_call.1} parent=1 // pred_fallthru
      _
    // Predicated region
    $region30: #{tpu_custom_call.1} parent=1 // pred_check
      _
    $region31: #{tpu_custom_call.1} parent=1 // pred_check_branch
      %421 = sbr.rel (0) target = $region33
    $region32: #{tpu_custom_call.1} parent=1 // pred_region
      %422 = dma.done [#allocation4], 4096
    $region33: #{tpu_custom_call.1} parent=1 // pred_fallthru
      _
    %423 = vsyncpa [#allocation3], 1
    %424 = vsyncpa [#allocation6], 1
    %425 = vsyncpa [#allocation4], 1

</llo_original>
